<compile_context>
chip_gen: v5e
topology: v5e:2x2
jax: 0.10.0
libtpu: 0.0.40
codegen_flags: <defaults>
</compile_context>

<pallas_src>
import jax
import jax.numpy as jnp
from jax.experimental import pallas as pl
from jax.experimental.pallas import tpu as pltpu

ALPHAS = [0.768, 0.863, 0.46, 0.39]
GAMMA = 2          # specialized: squared explicitly in the kernel
_LANES = 128


def _cdiv(a, b):
    return (a + b - 1) // b


def _round_up(x, m):
    return _cdiv(x, m) * m


def _sublane_multiple(dtype):
    # minimum second-minor tile: 8 (32-bit), 16 (16-bit), 32 (8-bit)
    return max(8, 32 // jnp.dtype(dtype).itemsize)


def _default_num_cores():
    # 2 TensorCores per device only on v7x-class chips; v5e/v6e have 1.
    try:
        kind = jax.devices()[0].device_kind.lower()
    except Exception:
        return 1
    return 2 if ("v7" in kind or "7x" in kind) else 1


def _make_focal_kernel(alphas, blk, g2, total, needs_mask, hard_targets):
    c = len(alphas)
    alphas = tuple(float(a) for a in alphas)
    c_is_pow2 = (c & (c - 1)) == 0

    def kernel(x_ref, t_ref, out_ref):
        # Grid: (core, block).  out_ref is this core's resident (8, 128)
        # partial-sum accumulator (output index_map is constant along axis 1).
        j = pl.program_id(1)

        @pl.when(j == 0)
        def _init():
            out_ref[...] = jnp.zeros_like(out_ref)

        x = x_ref[...].astype(jnp.float32)     # (blk, 128) probabilities
        t = t_ref[...].astype(jnp.float32)     # (blk, 128) targets

        if needs_mask:
            # In-kernel tail masking replaces host-side padding: any element
            # whose flat index is >= total is garbage (partial / clamped
            # block) and is replaced by the neutral pair x=1, t=1 (f_loss=0)
            # BEFORE the logs, so no NaN/Inf can reach the accumulator.
            row_start = (pl.program_id(0) * g2 + j) * blk
            rows = jax.lax.broadcasted_iota(jnp.int32, (blk, _LANES), 0)
            lanes = jax.lax.broadcasted_iota(jnp.int32, (blk, _LANES), 1)
            flat = (row_start + rows) * _LANES + lanes
            valid = flat < total
            x = jnp.where(valid, x, 1.0)
            t = jnp.where(valid, t, 1.0)

        # Per-lane alpha built from splat constants + lane iota (the flat
        # layout repeats the C classes with period C along the lane axis).
        lane = jax.lax.broadcasted_iota(jnp.int32, (1, _LANES), 1)
        cls = (lane & (c - 1)) if c_is_pow2 else (lane % c)
        a = jnp.full((1, _LANES), alphas[-1], jnp.float32)
        for k in range(c - 1):
            a = jnp.where(cls == k, alphas[k], a)
        # alpha*t + (1-alpha)*(1-t) as one fused mul-add
        alpha_factor = (1.0 - a) + (2.0 * a - 1.0) * t

        if hard_targets:
            # Binary-target fast path: 1 transcendental / element.
            pt = jnp.where(t >= 0.5, x, 1.0 - x)
            bce = -jnp.maximum(jnp.log(pt), -100.0)
        else:
            # Exact PyTorch binary_cross_entropy (soft targets supported):
            # clamp each log at -100, then combine; pt = exp(-bce).
            log_p = jnp.maximum(jnp.log(x), -100.0)
            log_1mp = jnp.maximum(jnp.log(1.0 - x), -100.0)
            bce = -(t * log_p + (1.0 - t) * log_1mp)
            pt = jnp.exp(-bce)

        one_minus_pt = 1.0 - pt
        f = alpha_factor * (one_minus_pt * one_minus_pt) * bce   # gamma == 2

        # Reduce the block to one (8, 128) tile with pure vreg+vreg adds (no
        # cross-lane XLU work); accumulate into the resident output block.
        out_ref[...] += f.reshape(blk // 8, 8, _LANES).sum(axis=0)

    return kernel


def focal_loss(inputs, targets, alphas=ALPHAS, *, block_rows=4096,
               num_cores=None, hard_targets=False):
    """inputs, targets: (N, C) arrays (any float/int dtype); returns scalar mean focal loss."""
    n, c = inputs.shape
    assert targets.shape == (n, c), "inputs / targets shape mismatch"
    assert c == len(alphas), "num classes must match len(alphas)"
    assert _LANES % c == 0, "C must divide 128 for the lane-dense layout"
    total = n * c

    sub = max(_sublane_multiple(inputs.dtype), _sublane_multiple(targets.dtype))
    block_rows = max(_round_up(block_rows, sub), sub)
    if num_cores is None:
        num_cores = _default_num_cores()

    x_flat = inputs.reshape(-1)
    t_flat = targets.reshape(-1)

    # Lane-dense (M, 128) view.  Zero-copy (pure reshape) when N*C is a
    # multiple of 128 and at least one sublane tile; otherwise pad by
    # < sub*128 elements with neutral values (x=1, t=1 -> f_loss = 0).
    padded_len = max(_round_up(total, _LANES), sub * _LANES)
    pad = padded_len - total
    if pad:
        # TODO(synk): a manual-DMA (memory_space=pl.ANY) path could make this
        # fully zero-copy for N*C not a multiple of 128; here the concatenate
        # still copies the inputs (pad itself is < sub*128 elements).
        x_flat = jnp.concatenate([x_flat, jnp.ones((pad,), x_flat.dtype)])
        t_flat = jnp.concatenate([t_flat, jnp.ones((pad,), t_flat.dtype)])
    m0 = padded_len // _LANES
    x2 = x_flat.reshape(m0, _LANES)
    t2 = t_flat.reshape(m0, _LANES)

    # Core split + block size.  blk never exceeds the array's row count; the
    # (possibly partial) last block and any redundant clamped steps are
    # neutralized by the in-kernel mask.
    num_cores = max(1, min(num_cores, m0 // sub))
    if m0 >= num_cores * block_rows:
        blk = block_rows
    else:
        blk = min(_round_up(_cdiv(m0, num_cores), sub), (m0 // sub) * sub)
    nblocks = _cdiv(m0, blk)
    g2 = _cdiv(nblocks, num_cores)
    # Mask only needed if the grid covers more elements than the padded array.
    needs_mask = (num_cores * g2 * blk * _LANES) != padded_len

    last_block = nblocks - 1
    if num_cores * g2 > nblocks:
        # Redundant trailing steps re-read the last valid block (in-bounds);
        # the kernel mask (driven by program_id, not this clamp) zeroes them.
        def in_map(i, j):
            return (jnp.minimum(i * g2 + j, last_block), 0)
    else:
        def in_map(i, j):
            return (i * g2 + j, 0)

    kernel = _make_focal_kernel(tuple(alphas), blk, g2, total, needs_mask,
                                hard_targets)

    partials = pl.pallas_call(
        kernel,
        out_shape=jax.ShapeDtypeStruct((num_cores * 8, _LANES), jnp.float32),
        grid_spec=pltpu.PrefetchScalarGridSpec(
            num_scalar_prefetch=0,
            grid=(num_cores, g2),
            in_specs=[
                pl.BlockSpec((blk, _LANES), in_map),
                pl.BlockSpec((blk, _LANES), in_map),
            ],
            out_specs=pl.BlockSpec((8, _LANES), lambda i, j: (i, 0)),
        ),
        compiler_params=pltpu.CompilerParams(
            dimension_semantics=("parallel", "arbitrary"),
            vmem_limit_bytes=32 * 1024 * 1024),
    )(x2, t2)

    # Single tiny cross-lane reduce + mean scaling by the TRUE element count.
    return jnp.sum(partials) * (1.0 / total)


def focal_loss_ref(inputs, targets, alphas=ALPHAS):
    """Pure-JAX reference mirroring the PyTorch module."""
    a = jnp.asarray(alphas, dtype=jnp.float32).reshape(1, -1)
    x = inputs.astype(jnp.float32)
    t = targets.astype(jnp.float32)
    log_p = jnp.maximum(jnp.log(x), -100.0)
    log_1mp = jnp.maximum(jnp.log(1.0 - x), -100.0)
    bce = -(t * log_p + (1.0 - t) * log_1mp)
    pt = jnp.exp(-bce)
    alpha_factor = a * t + (1.0 - a) * (1.0 - t)
    f_loss = alpha_factor * (1.0 - pt) ** GAMMA * bce
    return jnp.mean(f_loss)


if __name__ == "__main__":
    key = jax.random.PRNGKey(0)
    k1, k2 = jax.random.split(key)
    C = len(ALPHAS)

    # Main case: N*C = 2048 (multiple of 128) -> zero-copy lane-dense path.
    N = 512
    inputs = jax.nn.sigmoid(jax.random.normal(k1, (N, C), dtype=jnp.float32))
    targets = jax.random.bernoulli(k2, 0.5, (N, C)).astype(jnp.float32)

    loss = jax.block_until_ready(focal_loss(inputs, targets))
    ref = focal_loss_ref(inputs, targets)
    assert jnp.allclose(loss, ref, rtol=1e-5, atol=1e-6), (loss, ref)

    # Hard-target fast path (1 transcendental / element); targets are binary.
    loss_h = jax.block_until_ready(focal_loss(inputs, targets, hard_targets=True))
    assert jnp.allclose(loss_h, ref, rtol=1e-5, atol=1e-6), (loss_h, ref)

    # bf16 inputs (halved HBM read traffic); kernel upcasts to f32 internally.
    inputs_bf16 = inputs.astype(jnp.bfloat16)
    loss_b = jax.block_until_ready(focal_loss(inputs_bf16, targets))
    ref_b = focal_loss_ref(inputs_bf16, targets)
    assert jnp.allclose(loss_b, ref_b, rtol=1e-5, atol=1e-5), (loss_b, ref_b)

    # Partial last block (N*C = 3200 = 25 rows, not a block multiple):
    # exercises the in-kernel tail mask with no host-side padding copy.
    N3 = 800
    inputs3 = jax.nn.sigmoid(jax.random.normal(k1, (N3, C), dtype=jnp.float32))
    targets3 = jax.random.bernoulli(k2, 0.5, (N3, C)).astype(jnp.float32)
    loss3 = jax.block_until_ready(focal_loss(inputs3, targets3))
    ref3 = focal_loss_ref(inputs3, targets3)
    assert jnp.allclose(loss3, ref3, rtol=1e-5, atol=1e-6), (loss3, ref3)

    # Tiny, unaligned case (N*C = 32): tiny-pad fallback path.
    N2 = 8
    inputs2 = jax.nn.sigmoid(jax.random.normal(k1, (N2, C), dtype=jnp.float32))
    targets2 = jax.random.bernoulli(k2, 0.5, (N2, C)).astype(jnp.float32)
    loss2 = jax.block_until_ready(focal_loss(inputs2, targets2))
    ref2 = focal_loss_ref(inputs2, targets2)
    assert jnp.allclose(loss2, ref2, rtol=1e-5, atol=1e-6), (loss2, ref2)

    print("KERNEL_OK")
</pallas_src>

<mosaic_0001>
module attributes {stable_mosaic.version = 11 : i64} {
  func.func @kernel(%arg0: i32, %arg1: i32, %arg2: memref<16x128xf32, #tpu.memory_space<vmem>>, %arg3: memref<16x128xf32, #tpu.memory_space<vmem>>, %arg4: memref<8x128xf32, #tpu.memory_space<vmem>>) attributes {dimension_semantics = [#tpu.dimension_semantics<parallel>, #tpu.dimension_semantics<arbitrary>], iteration_bounds = array<i64: 1, 1>, scalar_prefetch = 0 : i64, scratch_operands = 0 : i64, tpu.core_type = #tpu.core_type<tc>, window_params = [{transform_indices = @transform_0, window_bounds = array<i64: 16, 128>}, {transform_indices = @transform_1, window_bounds = array<i64: 16, 128>}, {transform_indices = @transform_2, window_bounds = array<i64: 8, 128>}]} {
    %c0_i32 = arith.constant 0 : i32
    %0 = arith.cmpi eq, %arg1, %c0_i32 : i32
    %1 = arith.extui %0 : i1 to i32
    %c0_i32_0 = arith.constant 0 : i32
    %2 = arith.cmpi ne, %1, %c0_i32_0 : i32
    scf.if %2 {
      %cst_23 = arith.constant 0.000000e+00 : f32
      %59 = vector.broadcast %cst_23 : f32 to vector<8x128xf32>
      %c0_24 = arith.constant 0 : index
      %c0_25 = arith.constant 0 : index
      %60 = vector.load %arg4[%c0_24, %c0_25] : memref<8x128xf32, #tpu.memory_space<vmem>>, vector<8x128xf32>
      tpu.vector_store %arg4[%c0_24, %c0_25], %59 {strides = array<i32>} : memref<8x128xf32, #tpu.memory_space<vmem>>, vector<8x128xf32>,
    } else {
    }
    %c0 = arith.constant 0 : index
    %c0_1 = arith.constant 0 : index
    %3 = vector.load %arg2[%c0, %c0_1] : memref<16x128xf32, #tpu.memory_space<vmem>>, vector<16x128xf32>
    %c0_2 = arith.constant 0 : index
    %c0_3 = arith.constant 0 : index
    %4 = vector.load %arg3[%c0_2, %c0_3] : memref<16x128xf32, #tpu.memory_space<vmem>>, vector<16x128xf32>
    %5 = tpu.iota {dimensions = array<i32: 1>} : vector<1x128xi32>
    %c3_i32 = arith.constant 3 : i32
    %6 = vector.broadcast %c3_i32 : i32 to vector<1x128xi32>
    %7 = arith.andi %5, %6 : vector<1x128xi32>
    %cst = arith.constant 3.900000e-01 : f32
    %8 = vector.broadcast %cst : f32 to vector<1x128xf32>
    %c0_i32_4 = arith.constant 0 : i32
    %9 = vector.broadcast %c0_i32_4 : i32 to vector<1x128xi32>
    %10 = arith.cmpi eq, %7, %9 : vector<1x128xi32>
    %cst_5 = arith.constant 7.680000e-01 : f32
    %11 = vector.broadcast %cst_5 : f32 to vector<1x128xf32>
    %12 = arith.select %10, %11, %8 : vector<1x128xi1>, vector<1x128xf32>
    %c1_i32 = arith.constant 1 : i32
    %13 = vector.broadcast %c1_i32 : i32 to vector<1x128xi32>
    %14 = arith.cmpi eq, %7, %13 : vector<1x128xi32>
    %cst_6 = arith.constant 0.862999975 : f32
    %15 = vector.broadcast %cst_6 : f32 to vector<1x128xf32>
    %16 = arith.select %14, %15, %12 : vector<1x128xi1>, vector<1x128xf32>
    %c2_i32 = arith.constant 2 : i32
    %17 = vector.broadcast %c2_i32 : i32 to vector<1x128xi32>
    %18 = arith.cmpi eq, %7, %17 : vector<1x128xi32>
    %cst_7 = arith.constant 4.600000e-01 : f32
    %19 = vector.broadcast %cst_7 : f32 to vector<1x128xf32>
    %20 = arith.select %18, %19, %16 : vector<1x128xi1>, vector<1x128xf32>
    %cst_8 = arith.constant 1.000000e+00 : f32
    %21 = vector.broadcast %cst_8 : f32 to vector<1x128xf32>
    %22 = arith.subf %21, %20 : vector<1x128xf32>
    %cst_9 = arith.constant 2.000000e+00 : f32
    %23 = vector.broadcast %cst_9 : f32 to vector<1x128xf32>
    %24 = arith.mulf %23, %20 : vector<1x128xf32>
    %cst_10 = arith.constant 1.000000e+00 : f32
    %25 = vector.broadcast %cst_10 : f32 to vector<1x128xf32>
    %26 = arith.subf %24, %25 : vector<1x128xf32>
    %27 = vector.broadcast %26 : vector<1x128xf32> to vector<16x128xf32>
    %28 = arith.mulf %27, %4 : vector<16x128xf32>
    %29 = vector.broadcast %22 : vector<1x128xf32> to vector<16x128xf32>
    %30 = arith.addf %29, %28 : vector<16x128xf32>
    %31 = math.log %3 : vector<16x128xf32>
    %cst_11 = arith.constant -1.000000e+02 : f32
    %32 = vector.broadcast %cst_11 : f32 to vector<16x128xf32>
    %33 = arith.maximumf %31, %32 : vector<16x128xf32>
    %cst_12 = arith.constant 1.000000e+00 : f32
    %34 = vector.broadcast %cst_12 : f32 to vector<16x128xf32>
    %35 = arith.subf %34, %3 : vector<16x128xf32>
    %36 = math.log %35 : vector<16x128xf32>
    %cst_13 = arith.constant -1.000000e+02 : f32
    %37 = vector.broadcast %cst_13 : f32 to vector<16x128xf32>
    %38 = arith.maximumf %36, %37 : vector<16x128xf32>
    %39 = arith.mulf %4, %33 : vector<16x128xf32>
    %cst_14 = arith.constant 1.000000e+00 : f32
    %40 = vector.broadcast %cst_14 : f32 to vector<16x128xf32>
    %41 = arith.subf %40, %4 : vector<16x128xf32>
    %42 = arith.mulf %41, %38 : vector<16x128xf32>
    %43 = arith.addf %39, %42 : vector<16x128xf32>
    %cst_15 = arith.constant 0.000000e+00 : f32
    %44 = vector.broadcast %cst_15 : f32 to vector<16x128xf32>
    %45 = arith.subf %44, %43 : vector<16x128xf32>
    %cst_16 = arith.constant 0.000000e+00 : f32
    %46 = vector.broadcast %cst_16 : f32 to vector<16x128xf32>
    %47 = arith.subf %46, %45 : vector<16x128xf32>
    %48 = math.exp %47 : vector<16x128xf32>
    %cst_17 = arith.constant 1.000000e+00 : f32
    %49 = vector.broadcast %cst_17 : f32 to vector<16x128xf32>
    %50 = arith.subf %49, %48 : vector<16x128xf32>
    %51 = arith.mulf %50, %50 : vector<16x128xf32>
    %52 = arith.mulf %30, %51 : vector<16x128xf32>
    %53 = arith.mulf %52, %45 : vector<16x128xf32>
    %c0_18 = arith.constant 0 : index
    %c0_19 = arith.constant 0 : index
    %54 = vector.load %arg4[%c0_18, %c0_19] : memref<8x128xf32, #tpu.memory_space<vmem>>, vector<8x128xf32>
    %55 = vector.shape_cast %53 : vector<16x128xf32> to vector<2x8x128xf32>
    %cst_20 = arith.constant dense<0.000000e+00> : vector<8x128xf32>
    %56 = vector.multi_reduction <add>, %55, %cst_20 [0] : vector<2x8x128xf32> to vector<8x128xf32>
    %57 = arith.addf %54, %56 : vector<8x128xf32>
    %c0_21 = arith.constant 0 : index
    %c0_22 = arith.constant 0 : index
    %58 = vector.load %arg4[%c0_21, %c0_22] : memref<8x128xf32, #tpu.memory_space<vmem>>, vector<8x128xf32>
    tpu.vector_store %arg4[%c0_21, %c0_22], %57 {strides = array<i32>} : memref<8x128xf32, #tpu.memory_space<vmem>>, vector<8x128xf32>,
    return
  }
  func.func @transform_0(%arg0: i32, %arg1: i32) -> (i32, i32) {
    %c1_i32 = arith.constant 1 : i32
    %0 = arith.muli %arg0, %c1_i32 : i32
    %1 = arith.addi %0, %arg1 : i32
    %c0_i32 = arith.constant 0 : i32
    %c0_i32_0 = arith.constant 0 : i32
    return %1, %c0_i32 : i32, i32
  }
  func.func @transform_1(%arg0: i32, %arg1: i32) -> (i32, i32) {
    %c1_i32 = arith.constant 1 : i32
    %0 = arith.muli %arg0, %c1_i32 : i32
    %1 = arith.addi %0, %arg1 : i32
    %c0_i32 = arith.constant 0 : i32
    %c0_i32_0 = arith.constant 0 : i32
    return %1, %c0_i32 : i32, i32
  }
  func.func @transform_2(%arg0: i32, %arg1: i32) -> (i32, i32) {
    %c0_i32 = arith.constant 0 : i32
    %c0_i32_0 = arith.constant 0 : i32
    return %arg0, %c0_i32 : i32, i32
  }
}

</mosaic_0001>

<llo_original>
// kernel: tpu_custom_call.1
$region0: #{tpu_custom_call.1}
  #allocation0 [shape = 'u32[]', space=smem, size = 0x4, offset = 0x4, fixed_abs, tag = 'smem constant byte address 0x4 - core index']
  #allocation1 [shape = 'u32[72,128]{1,0:T(1,128)}', space=vmem, size = 0x9000, scoped, tag = 'internal scratch']
  %s0 = inlined_call_operand.hbm [shape: f32[16,128], index: 0, kind: input, shape index: {}]
  %s1 = inlined_call_operand.hbm [shape: f32[16,128], index: 1, kind: input, shape index: {}]
  %s2 = inlined_call_operand.hbm [shape: f32[8,128], index: 2, kind: output, shape index: {}]
  %s3 = sld [smem:[#allocation0]]
  $region30: #{tpu_custom_call.1} parent=0
    _
  %s5 = ssub.s32 1, %s3
  %s6 = scalar_select 0, %s5, %s3
  $region1: #{tpu_custom_call.1} parent=0
    #allocation2 [shape = 'u8[8192]{0}', space=vmem, size = 0x2000, scoped, tag = 'input window, operand 0, single buffered']
    #allocation3 [shape = 's32[1]{0}', space=sflag, size = 0x4, scoped, tag = 'scoped memory for tpu_custom_call.1']
    #allocation4 [shape = 's32[1]{0}', space=sflag, size = 0x4, scoped, tag = 'scoped memory for tpu_custom_call.1']
    #allocation5 [shape = 'u8[8192]{0}', space=vmem, size = 0x2000, scoped, tag = 'input window, operand 1, single buffered']
    #allocation6 [shape = 's32[1]{0}', space=sflag, size = 0x4, scoped, tag = 'scoped memory for tpu_custom_call.1']
    #allocation7 [shape = 'u8[4096]{0}', space=vmem, size = 0x1000, scoped, tag = 'output window, operand 0, single buffered']
    %7 = vsyncpa [#allocation3], 0
    %8 = vsyncpa [#allocation6], 0
    %9 = vsyncpa [#allocation4], 0
    // Predicated region
    $region2: #{tpu_custom_call.1} parent=1 // pred_check
      _
    $region3: #{tpu_custom_call.1} parent=1 // pred_check_branch
      %11 = sbr.rel (0) target = $region5
    $region4: #{tpu_custom_call.1} parent=1 // pred_region
      %s12 = sadd.s32 0, 0
      %s13 = smul.u32 2, %s12
      %15 = vsyncadd [#allocation3], 0
      %s16 = smul.addr %s13, 8
      %s17 = scalar_lea.hbm %s0, %s16
      %s18 = sshll.u32 %s17, 4
      %s19 = int_to_ptr.hbm [resolvable:$true] %s18
      %s20 = sshll.u32 [#allocation2], 4
      %s21 = int_to_ptr.vmem [resolvable:$true] %s20
      %26 = dma.hbm_to_vmem [thread:$0]  %s19, 256, %s21, [#allocation3], 128, 128, 8
    $region5: #{tpu_custom_call.1} parent=1 // pred_fallthru
      _
    // Predicated region
    $region6: #{tpu_custom_call.1} parent=1 // pred_check
      _
    $region7: #{tpu_custom_call.1} parent=1 // pred_check_branch
      %28 = sbr.rel (0) target = $region9
    $region8: #{tpu_custom_call.1} parent=1 // pred_region
      %s29 = sadd.s32 0, 0
      %s30 = smul.u32 2, %s29
      %32 = vsyncadd [#allocation6], 0
      %s33 = smul.addr %s30, 8
      %s34 = scalar_lea.hbm %s1, %s33
      %s35 = sshll.u32 %s34, 4
      %s36 = int_to_ptr.hbm [resolvable:$true] %s35
      %s37 = sshll.u32 [#allocation5], 4
      %s38 = int_to_ptr.vmem [resolvable:$true] %s37
      %43 = dma.hbm_to_vmem [thread:$0]  %s36, 256, %s38, [#allocation6], 128, 128, 8
    $region9: #{tpu_custom_call.1} parent=1 // pred_fallthru
      _
    // Predicated region
    $region10: #{tpu_custom_call.1} parent=1 // pred_check
      _
    $region11: #{tpu_custom_call.1} parent=1 // pred_check_branch
      %45 = sbr.rel (0) target = $region13
    $region12: #{tpu_custom_call.1} parent=1 // pred_region
      %47 = dma.done [#allocation3], 256
    $region13: #{tpu_custom_call.1} parent=1 // pred_fallthru
      _
    // Predicated region
    $region14: #{tpu_custom_call.1} parent=1 // pred_check
      _
    $region15: #{tpu_custom_call.1} parent=1 // pred_check_branch
      %49 = sbr.rel (0) target = $region17
    $region16: #{tpu_custom_call.1} parent=1 // pred_region
      %51 = dma.done [#allocation6], 256
    $region17: #{tpu_custom_call.1} parent=1 // pred_fallthru
      _
    %s52 = sadd.s32 0, 0
    %s53 = smul.u32 2, %s52
    %s54 = sadd.s32 0, 0
    %s55 = smul.u32 2, %s54
    %p56 = scmp.eq.s32.totalorder 0, 0
    // Predicated region
    $region18: #{tpu_custom_call.1} parent=1 // pred_check
      %p57 = pneg %p56
    $region19: #{tpu_custom_call.1} parent=1 // pred_check_branch
      %59 = sbr.rel (%p57) target = $region21
    $region20: #{tpu_custom_call.1} parent=1 // pred_region
      %60 = vst [vmem:[#allocation7] sm:$0xff] 0.0
    $region21: #{tpu_custom_call.1} parent=1 // pred_fallthru
      _
    %v61 = vld [vmem:[#allocation2] sm:$0xff]
    %v62 = vld [vmem:[#allocation2 + $0x8] sm:$0xff]
    %v63 = vld [vmem:[#allocation5] sm:$0xff]
    %v64 = vld [vmem:[#allocation5 + $0x8] sm:$0xff]
    %v65 = vlaneseq
    %v66 = vand.u32 %v65, 127
    %v67 = vand.u32 %v66, 3
    %vm68 = vcmp.eq.s32.totalorder %v67, 0
    %v69 = vsel %vm68, 0.768, 0.39
    %vm70 = vcmp.eq.s32.totalorder %v67, 1
    %v71 = vsel %vm70, 0.863, %v69
    %vm72 = vcmp.eq.s32.totalorder %v67, 2
    %v73 = vsel %vm72, 0.46, %v71
    %v74 = vsub.f32 1.0, %v73
    %v75 = vmul.f32 %v73, 2.0
    %v76 = vsub.f32 %v75, 1.0
    %v77 = vmul.f32 %v76, %v63
    %v78 = vmul.f32 %v76, %v64
    %v79 = vadd.f32 %v74, %v77
    %v80 = vadd.f32 %v74, %v78
    %v81 = vlog2.pop %v61
    %v82 = vmul.f32 %v81, 0.6931472
    %v83 = vlog2.pop %v62
    %v84 = vmul.f32 %v83, 0.6931472
    %v85 = vmax.f32 %v82, -100.0
    %v86 = vmax.f32 %v84, -100.0
    %v87 = vsub.f32 1.0, %v61
    %v88 = vsub.f32 1.0, %v62
    %v89 = vlog2.pop %v87
    %v90 = vmul.f32 %v89, 0.6931472
    %v91 = vlog2.pop %v88
    %v92 = vmul.f32 %v91, 0.6931472
    %v93 = vmax.f32 %v90, -100.0
    %v94 = vmax.f32 %v92, -100.0
    %v95 = vmul.f32 %v63, %v85
    %v96 = vmul.f32 %v64, %v86
    %v97 = vsub.f32 1.0, %v63
    %v98 = vsub.f32 1.0, %v64
    %v99 = vmul.f32 %v97, %v93
    %v100 = vmul.f32 %v98, %v94
    %v101 = vadd.f32 %v95, %v99
    %v102 = vadd.f32 %v96, %v100
    %v103 = vsub.f32 0.0, %v101
    %v104 = vsub.f32 0.0, %v102
    %v105 = vsub.f32 0.0, %v103
    %v106 = vsub.f32 0.0, %v104
    %v107 = vmul.f32 %v105, 1.442695
    %v108 = vpow.pop %v107
    %v109 = vmul.f32 %v106, 1.442695
    %v110 = vpow.pop %v109
    %v111 = vsub.f32 1.0, %v108
    %v112 = vsub.f32 1.0, %v110
    %v113 = vmul.f32 %v111, %v111
    %v114 = vmul.f32 %v112, %v112
    %v115 = vmul.f32 %v79, %v113
    %v116 = vmul.f32 %v80, %v114
    %v117 = vmul.f32 %v115, %v103
    %v118 = vmul.f32 %v116, %v104
    %v119 = vld [vmem:[#allocation7] sm:$0xff]
    %v120 = vadd.f32 %v117, %v118
    %v121 = vadd.f32 %v119, %v120
    %122 = vst [vmem:[#allocation7] sm:$0xff] %v121
    // Predicated region
    $region22: #{tpu_custom_call.1} parent=1 // pred_check
      _
    $region23: #{tpu_custom_call.1} parent=1 // pred_check_branch
      %124 = sbr.rel (0) target = $region25
    $region24: #{tpu_custom_call.1} parent=1 // pred_region
      %126 = vsyncadd [#allocation4], 0
      %s128 = sshll.u32 [#allocation7], 4
      %s129 = int_to_ptr.vmem [resolvable:$true] %s128
      %s130 = sshll.u32 %s2, 4
      %s131 = int_to_ptr.hbm [resolvable:$true] %s130
      %133 = dma.vmem_to_hbm [thread:$0]  %s129, 128, %s131, [#allocation4]
    $region25: #{tpu_custom_call.1} parent=1 // pred_fallthru
      _
    // Predicated region
    $region26: #{tpu_custom_call.1} parent=1 // pred_check
      _
    $region27: #{tpu_custom_call.1} parent=1 // pred_check_branch
      %135 = sbr.rel (0) target = $region29
    $region28: #{tpu_custom_call.1} parent=1 // pred_region
      %137 = dma.done [#allocation4], 128
    $region29: #{tpu_custom_call.1} parent=1 // pred_fallthru
      _
    %138 = vsyncpa [#allocation3], 1
    %139 = vsyncpa [#allocation6], 1
    %140 = vsyncpa [#allocation4], 1

</llo_original>
